<compile_context>
chip_gen: v7x
topology: tpu7x:2x2x1
jax: 0.10.0
libtpu: 0.0.40
codegen_flags: <defaults>
</compile_context>

<pallas_src>
import jax
import jax.numpy as jnp
from jax.experimental import pallas as pl
from jax.experimental.pallas import tpu as pltpu


def _toy_mp_kernel(x_ref, w1_ref, b1_ref, w2_ref, b2_ref, o_ref):
    # x_ref:  [TM, 10]  batch-major block (contiguous in HBM)
    # w1_ref: [10, 10]  net1 weight, PyTorch [out, in] layout (compute dtype)
    # b1_ref: [10, 1]   f32 column (broadcasts over the lane/batch axis)
    # w2_ref: [5, 10]   net2 weight, PyTorch [out, in] layout (compute dtype)
    # b2_ref: [5, 1]    f32 column
    # o_ref:  [5, TM]   lane-dense output block (batch on lanes)
    x = x_ref[...].astype(w1_ref.dtype)         # MXU operand cast, in-kernel

    # net1: h[o, b] = sum_k w1[o, k] * x[b, k]  -> [10, TM], f32 accumulation.
    # Contracting both operands on their last dim keeps the result lane-dense
    # without any wrapper-side transpose of x.
    h = jax.lax.dot_general(
        w1_ref[...], x,
        dimension_numbers=(((1,), (1,)), ((), ())),
        preferred_element_type=jnp.float32)
    h = jnp.maximum(h + b1_ref[...], 0.0)                   # bias + ReLU in f32

    # net2: [5, 10] @ [10, TM] -> [5, TM], f32 accumulation.
    out = jnp.dot(w2_ref[...], h.astype(w2_ref.dtype),
                  preferred_element_type=jnp.float32)
    o_ref[...] = (out + b2_ref[...]).astype(o_ref.dtype)    # bias add in f32


def toy_mp_model(x, w1, b1, w2, b2, *, tile=8192, compute_dtype=jnp.bfloat16,
                 out_dtype=None, out_batch_major=True):
    """ToyMpModel forward:  net2(relu(net1(x))).

    x:  [B, 10]   input batch (pass bf16 to also halve the HBM input stream)
    w1: [10, 10]  net1 weight, PyTorch layout [out_features, in_features]
    b1: [10]      net1 bias
    w2: [5, 10]   net2 weight, PyTorch layout [out_features, in_features]
    b2: [5]       net2 bias
    tile:          target batch tile (lanes); rounded to a multiple of 128.
    compute_dtype: MXU operand dtype (cast in-kernel); accumulation, bias adds
                   and ReLU always run in f32.  Use jnp.float32 for exactness.
    out_dtype:     output dtype (defaults to x.dtype).
    out_batch_major: True -> return [B, 5] (PyTorch-facing); False -> return
                   the kernel's native lane-dense [5, B] with no extra pass.
    """
    B, K = x.shape
    N1, _ = w1.shape
    N2, _ = w2.shape
    out_dtype = x.dtype if out_dtype is None else out_dtype
    compute_dtype = x.dtype if compute_dtype is None else compute_dtype

    # ---- batch tiling (HBM/overhead reasoning only; MXU is <1% utilized) ----
    b_lanes = pl.cdiv(B, 128) * 128                  # round_up(B, 128)
    tile = max(128, pl.cdiv(int(tile), 128) * 128)   # enforce 128-lane multiple
    num_steps = pl.cdiv(b_lanes, tile)
    if b_lanes >= 256:
        num_steps = max(num_steps, 2)                # >=2 steps: v7x megacore
        num_steps += num_steps % 2                   # prefer an even TC split
    # Recompute the tile from the step count so tail waste stays <128 lanes per
    # step however large `tile` is, then take the exact step cover.
    tm = pl.cdiv(pl.cdiv(b_lanes, num_steps), 128) * 128
    num_steps = pl.cdiv(b_lanes, tm)

    w1_c = w1.astype(compute_dtype)
    w2_c = w2.astype(compute_dtype)
    b1_col = b1.astype(jnp.float32).reshape(N1, 1)
    b2_col = b2.astype(jnp.float32).reshape(N2, 1)

    x_item = jnp.dtype(x.dtype).itemsize
    o_item = jnp.dtype(out_dtype).itemsize
    c_item = jnp.dtype(compute_dtype).itemsize
    _lane = lambda n: pl.cdiv(n, 128) * 128
    _sub = lambda n: pl.cdiv(n, 8) * 8

    # Double-buffered working set (x blocks are lane-padded to 128 in VMEM).
    vmem_need = (2 * tm * _lane(K) * x_item                  # x blocks
                 + 2 * _sub(N2) * tm * o_item                # out blocks
                 + _sub(N1) * _lane(K) * c_item              # w1 (resident)
                 + _sub(N2) * _lane(N1) * c_item             # w2 (resident)
                 + (_sub(N1) + _sub(N2)) * 128 * 4)          # bias columns
    vmem_limit = int(min(128 << 20, max(32 << 20, 2 * vmem_need)))

    flops = 2 * B * (K * N1 + N1 * N2)
    bytes_accessed = (B * K * x_item + B * N2 * o_item
                      + w1_c.size * c_item + w2_c.size * c_item
                      + (N1 + N2) * 4)

    out_t = pl.pallas_call(
        _toy_mp_kernel,
        out_shape=jax.ShapeDtypeStruct((N2, B), out_dtype),
        grid_spec=pltpu.PrefetchScalarGridSpec(
            num_scalar_prefetch=0,
            grid=(num_steps,),
            in_specs=[
                pl.BlockSpec((tm, K), lambda i: (i, 0)),     # x: contiguous HBM
                pl.BlockSpec((N1, K), lambda i: (0, 0)),     # w1: VMEM-resident
                pl.BlockSpec((N1, 1), lambda i: (0, 0)),     # b1 column
                pl.BlockSpec((N2, N1), lambda i: (0, 0)),    # w2: VMEM-resident
                pl.BlockSpec((N2, 1), lambda i: (0, 0)),     # b2 column
            ],
            out_specs=pl.BlockSpec((N2, tm), lambda i: (0, i)),  # lane-dense
        ),
        compiler_params=pltpu.CompilerParams(
            dimension_semantics=("parallel",),               # v7x: 2 TCs
            vmem_limit_bytes=vmem_limit,
        ),
        cost_estimate=pl.CostEstimate(
            flops=flops, transcendentals=0, bytes_accessed=bytes_accessed),
    )(x, w1_c, b1_col, w2_c, b2_col)

    if out_batch_major:
        return jnp.transpose(out_t)      # [B, 5] — small layout-plumbing pass
    return out_t                         # [5, B] — lane-dense, no extra pass


def init_params(key):
    """Deterministic init mimicking torch.nn.Linear (uniform +/- 1/sqrt(fan_in))."""
    k1, k2, k3, k4 = jax.random.split(key, 4)
    bound = 1.0 / jnp.sqrt(10.0)         # fan_in = 10 for both layers
    # PyTorch layout [out_features, in_features]
    w1 = jax.random.uniform(k1, (10, 10), jnp.float32, -bound, bound)
    b1 = jax.random.uniform(k2, (10,), jnp.float32, -bound, bound)
    w2 = jax.random.uniform(k3, (5, 10), jnp.float32, -bound, bound)
    b2 = jax.random.uniform(k4, (5,), jnp.float32, -bound, bound)
    return w1, b1, w2, b2


if __name__ == "__main__":
    key = jax.random.PRNGKey(0)
    kx, kp, kx2 = jax.random.split(key, 3)
    w1, b1, w2, b2 = init_params(kp)

    def ref_fwd(xv):
        # Same math as the PyTorch forward: net2(relu(net1(x)))
        return jnp.maximum(xv @ w1.T + b1, 0.0) @ w2.T + b2

    # Small batch: single (partial) tile, exact f32 compute path.
    x = jax.random.normal(kx, (8, 10), jnp.float32)
    out = jax.block_until_ready(
        toy_mp_model(x, w1, b1, w2, b2, compute_dtype=jnp.float32))
    assert out.shape == (8, 5)
    assert jnp.allclose(out, ref_fwd(x), atol=1e-5, rtol=1e-5)

    # Ragged batch: 2 parallel grid steps, partial last block, f32 compute.
    x2 = jax.random.normal(kx2, (1000, 10), jnp.float32)
    out2 = jax.block_until_ready(
        toy_mp_model(x2, w1, b1, w2, b2, compute_dtype=jnp.float32))
    assert out2.shape == (1000, 5)
    assert jnp.allclose(out2, ref_fwd(x2), atol=1e-4, rtol=1e-4)

    # Default bf16 MXU-streaming path (f32 accumulate + f32 bias/ReLU).
    out_bf = jax.block_until_ready(toy_mp_model(x2, w1, b1, w2, b2))
    assert out_bf.shape == (1000, 5)
    assert jnp.allclose(out_bf, ref_fwd(x2), atol=5e-2, rtol=5e-2)

    # Lane-dense [5, B] output (no wrapper transpose) for feature-major callers.
    out_fm = jax.block_until_ready(
        toy_mp_model(x2, w1, b1, w2, b2, out_batch_major=False))
    assert out_fm.shape == (5, 1000)
    assert jnp.allclose(out_fm, ref_fwd(x2).T, atol=5e-2, rtol=5e-2)

    print("KERNEL_OK")
</pallas_src>

<mosaic_0001>
module attributes {stable_mosaic.version = 11 : i64} {
  func.func @_toy_mp_kernel(%arg0: i32, %arg1: memref<128x10xf32, #tpu.memory_space<vmem>>, %arg2: memref<10x10xf32, #tpu.memory_space<vmem>>, %arg3: memref<10x1xf32, #tpu.memory_space<vmem>>, %arg4: memref<5x10xf32, #tpu.memory_space<vmem>>, %arg5: memref<5x1xf32, #tpu.memory_space<vmem>>, %arg6: memref<5x128xf32, #tpu.memory_space<vmem>>) attributes {dimension_semantics = [#tpu.dimension_semantics<parallel>], iteration_bounds = array<i64: 1>, scalar_prefetch = 0 : i64, scratch_operands = 0 : i64, tpu.core_type = #tpu.core_type<tc>, window_params = [{transform_indices = @transform_0, window_bounds = array<i64: 128, 10>}, {pipeline_mode = #tpu.pipeline_mode<synchronous>, transform_indices = @transform_1, window_bounds = array<i64: 10, 10>}, {pipeline_mode = #tpu.pipeline_mode<synchronous>, transform_indices = @transform_2, window_bounds = array<i64: 10, 1>}, {pipeline_mode = #tpu.pipeline_mode<synchronous>, transform_indices = @transform_3, window_bounds = array<i64: 5, 10>}, {pipeline_mode = #tpu.pipeline_mode<synchronous>, transform_indices = @transform_4, window_bounds = array<i64: 5, 1>}, {transform_indices = @transform_5, window_bounds = array<i64: 5, 128>}]} {
    %c0 = arith.constant 0 : index
    %c0_0 = arith.constant 0 : index
    %0 = vector.load %arg1[%c0, %c0_0] : memref<128x10xf32, #tpu.memory_space<vmem>>, vector<128x10xf32>
    %c0_1 = arith.constant 0 : index
    %c0_2 = arith.constant 0 : index
    %1 = vector.load %arg2[%c0_1, %c0_2] : memref<10x10xf32, #tpu.memory_space<vmem>>, vector<10x10xf32>
    %cst = arith.constant dense<0.000000e+00> : vector<10x128xf32>
    %2 = tpu.matmul %1, %0, %cst {dimension_numbers = #tpu.dot_dimension_numbers<[1], [1], [0], [0], [0, 0, 1, 0], [], []>} : vector<10x10xf32>, vector<128x10xf32>, vector<10x128xf32> -> vector<10x128xf32>
    %c0_3 = arith.constant 0 : index
    %c0_4 = arith.constant 0 : index
    %3 = vector.load %arg3[%c0_3, %c0_4] : memref<10x1xf32, #tpu.memory_space<vmem>>, vector<10x1xf32>
    %4 = vector.broadcast %3 : vector<10x1xf32> to vector<10x128xf32>
    %5 = arith.addf %2, %4 : vector<10x128xf32>
    %cst_5 = arith.constant 0.000000e+00 : f32
    %6 = vector.broadcast %cst_5 : f32 to vector<10x128xf32>
    %7 = arith.maximumf %5, %6 : vector<10x128xf32>
    %c0_6 = arith.constant 0 : index
    %c0_7 = arith.constant 0 : index
    %8 = vector.load %arg4[%c0_6, %c0_7] : memref<5x10xf32, #tpu.memory_space<vmem>>, vector<5x10xf32>
    %cst_8 = arith.constant dense<0.000000e+00> : vector<5x128xf32>
    %9 = tpu.matmul %8, %7, %cst_8 {dimension_numbers = #tpu.dot_dimension_numbers<[1], [0], [0], [1], [0, 0, 1, 1], [], []>} : vector<5x10xf32>, vector<10x128xf32>, vector<5x128xf32> -> vector<5x128xf32>
    %c0_9 = arith.constant 0 : index
    %c0_10 = arith.constant 0 : index
    %10 = vector.load %arg5[%c0_9, %c0_10] : memref<5x1xf32, #tpu.memory_space<vmem>>, vector<5x1xf32>
    %11 = vector.broadcast %10 : vector<5x1xf32> to vector<5x128xf32>
    %12 = arith.addf %9, %11 : vector<5x128xf32>
    %c0_11 = arith.constant 0 : index
    %c0_12 = arith.constant 0 : index
    %13 = vector.load %arg6[%c0_11, %c0_12] : memref<5x128xf32, #tpu.memory_space<vmem>>, vector<5x128xf32>
    tpu.vector_store %arg6[%c0_11, %c0_12], %12 {strides = array<i32>} : memref<5x128xf32, #tpu.memory_space<vmem>>, vector<5x128xf32>,
    return
  }
  func.func @transform_0(%arg0: i32) -> (i32, i32) {
    %c0_i32 = arith.constant 0 : i32
    %c0_i32_0 = arith.constant 0 : i32
    return %arg0, %c0_i32 : i32, i32
  }
  func.func @transform_1(%arg0: i32) -> (i32, i32) {
    %c0_i32 = arith.constant 0 : i32
    %c0_i32_0 = arith.constant 0 : i32
    %c0_i32_1 = arith.constant 0 : i32
    return %c0_i32, %c0_i32_0 : i32, i32
  }
  func.func @transform_2(%arg0: i32) -> (i32, i32) {
    %c0_i32 = arith.constant 0 : i32
    %c0_i32_0 = arith.constant 0 : i32
    %c0_i32_1 = arith.constant 0 : i32
    return %c0_i32, %c0_i32_0 : i32, i32
  }
  func.func @transform_3(%arg0: i32) -> (i32, i32) {
    %c0_i32 = arith.constant 0 : i32
    %c0_i32_0 = arith.constant 0 : i32
    %c0_i32_1 = arith.constant 0 : i32
    return %c0_i32, %c0_i32_0 : i32, i32
  }
  func.func @transform_4(%arg0: i32) -> (i32, i32) {
    %c0_i32 = arith.constant 0 : i32
    %c0_i32_0 = arith.constant 0 : i32
    %c0_i32_1 = arith.constant 0 : i32
    return %c0_i32, %c0_i32_0 : i32, i32
  }
  func.func @transform_5(%arg0: i32) -> (i32, i32) {
    %c0_i32 = arith.constant 0 : i32
    %c0_i32_0 = arith.constant 0 : i32
    return %c0_i32, %arg0 : i32, i32
  }
}

</mosaic_0001>

<llo_original>
// kernel: tpu_custom_call.1
$region0: #{tpu_custom_call.1}
  #allocation0 [shape = 'u32[]', space=smem, size = 0x4, offset = 0x4, fixed_abs, tag = 'smem constant byte address 0x4 - core index']
  #allocation1 [shape = 'u32[144,128]{1,0:T(1,128)}', space=vmem, size = 0x12000, scoped, tag = 'internal scratch']
  %s0 = inlined_call_operand.vmem [shape: f32[8,10], index: 0, kind: input, shape index: {}]
  %s1 = inlined_call_operand.vmem [shape: f32[10,10], index: 1, kind: input, shape index: {}]
  %s2 = inlined_call_operand.vmem [shape: f32[10,1], index: 2, kind: input, shape index: {}]
  %s3 = inlined_call_operand.vmem [shape: f32[5,10], index: 3, kind: input, shape index: {}]
  %s4 = inlined_call_operand.vmem [shape: f32[5,1], index: 4, kind: input, shape index: {}]
  %s5 = inlined_call_operand.hbm [shape: f32[5,8], index: 5, kind: output, shape index: {}]
  %s6 = sld [smem:[#allocation0]]
  $region30: #{tpu_custom_call.1} parent=0
    _
  %s8 = ssub.s32 1, %s6
  %s9 = scalar_select 0, %s8, %s6
  $region1: #{tpu_custom_call.1} parent=0
    #allocation2 [shape = 'u8[4096]{0}', space=vmem, size = 0x1000, scoped, tag = 'output window, operand 0, single buffered']
    #allocation3 [shape = 's32[1]{0}', space=sflag, size = 0x4, scoped, tag = 'scoped memory for tpu_custom_call.1']
    %10 = vsyncpa [#allocation3], 0
    // Predicated region
    $region2: #{tpu_custom_call.1} parent=1 // pred_check
      _
    $region3: #{tpu_custom_call.1} parent=1 // pred_check_branch
      %12 = sbr.rel (0) target = $region5
    $region4: #{tpu_custom_call.1} parent=1 // pred_region
      _
    $region5: #{tpu_custom_call.1} parent=1 // pred_fallthru
      _
    // Predicated region
    $region6: #{tpu_custom_call.1} parent=1 // pred_check
      _
    $region7: #{tpu_custom_call.1} parent=1 // pred_check_branch
      %14 = sbr.rel (0) target = $region9
    $region8: #{tpu_custom_call.1} parent=1 // pred_region
      _
    $region9: #{tpu_custom_call.1} parent=1 // pred_fallthru
      _
    // Predicated region
    $region10: #{tpu_custom_call.1} parent=1 // pred_check
      _
    $region11: #{tpu_custom_call.1} parent=1 // pred_check_branch
      %16 = sbr.rel (0) target = $region13
    $region12: #{tpu_custom_call.1} parent=1 // pred_region
      _
    $region13: #{tpu_custom_call.1} parent=1 // pred_fallthru
      _
    // Predicated region
    $region14: #{tpu_custom_call.1} parent=1 // pred_check
      _
    $region15: #{tpu_custom_call.1} parent=1 // pred_check_branch
      %18 = sbr.rel (0) target = $region17
    $region16: #{tpu_custom_call.1} parent=1 // pred_region
      _
    $region17: #{tpu_custom_call.1} parent=1 // pred_fallthru
      _
    // Predicated region
    $region18: #{tpu_custom_call.1} parent=1 // pred_check
      _
    $region19: #{tpu_custom_call.1} parent=1 // pred_check_branch
      %20 = sbr.rel (0) target = $region21
    $region20: #{tpu_custom_call.1} parent=1 // pred_region
      _
    $region21: #{tpu_custom_call.1} parent=1 // pred_fallthru
      _
    %v21 = vld [vmem:[%s0] sm:$0xff]
    %v22 = vld [vmem:[%s0 + $0x8] sm:$0xff]
    %v23 = vld [vmem:[%s0 + $0x10] sm:$0xff]
    %v24 = vld [vmem:[%s0 + $0x18] sm:$0xff]
    %v25 = vld [vmem:[%s0 + $0x20] sm:$0xff]
    %v26 = vld [vmem:[%s0 + $0x28] sm:$0xff]
    %v27 = vld [vmem:[%s0 + $0x30] sm:$0xff]
    %v28 = vld [vmem:[%s0 + $0x38] sm:$0xff]
    %v29 = vld [vmem:[%s0 + $0x40] sm:$0xff]
    %v30 = vld [vmem:[%s0 + $0x48] sm:$0xff]
    %v31 = vld [vmem:[%s0 + $0x50] sm:$0xff]
    %v32 = vld [vmem:[%s0 + $0x58] sm:$0xff]
    %v33 = vld [vmem:[%s0 + $0x60] sm:$0xff]
    %v34 = vld [vmem:[%s0 + $0x68] sm:$0xff]
    %v35 = vld [vmem:[%s0 + $0x70] sm:$0xff]
    %v36 = vld [vmem:[%s0 + $0x78] sm:$0xff]
    %v37 = vld [vmem:[%s1] sm:$0xff]
    %v38 = vld [vmem:[%s1 + $0x8] sm:$0x3]
    %v39 = vld [vmem:[%s2] sm:$0xff]
    %v40 = vld [vmem:[%s2 + $0x8] sm:$0x3]
    %42 = vset.pattern.permute.xlu0 0
    %43 = vperm.xlu0 %42, %v39
    %v44 = vpop.permute.xlu0 %43
    %47 = vset.pattern.permute.xlu0 0
    %48 = vperm.xlu0 %47, %v40
    %v49 = vpop.permute.xlu0 %48
    %vm51 = vcmask 80896
    %v53 = vsel %vm51, %v37, 0
    %v56 = vsel %vm51, %v38, 0
    %v59 = vsel %vm51, %v21, 0
    %v62 = vsel %vm51, %v22, 0
    %v65 = vsel %vm51, %v23, 0
    %v68 = vsel %vm51, %v24, 0
    %v71 = vsel %vm51, %v25, 0
    %v74 = vsel %vm51, %v26, 0
    %v77 = vsel %vm51, %v27, 0
    %v80 = vsel %vm51, %v28, 0
    %v83 = vsel %vm51, %v29, 0
    %v86 = vsel %vm51, %v30, 0
    %v89 = vsel %vm51, %v31, 0
    %v92 = vsel %vm51, %v32, 0
    %v95 = vsel %vm51, %v33, 0
    %v98 = vsel %vm51, %v34, 0
    %v101 = vsel %vm51, %v35, 0
    %v104 = vsel %vm51, %v36, 0
    %106 = vmatprep.subr.mxu0 0.0
    %107 = vmatpush1.xpose.msra.mxu0 %v59
    %108 = vmatprep.subr.mxu0 0.0
    %109 = vmatpush1.xpose.msra.mxu0 %v62
    %110 = vmatprep.subr.mxu0 0.0
    %111 = vmatpush1.xpose.msra.mxu0 %v65
    %112 = vmatprep.subr.mxu0 0.0
    %113 = vmatpush1.xpose.msra.mxu0 %v68
    %114 = vmatprep.subr.mxu0 0.0
    %115 = vmatpush1.xpose.msra.mxu0 %v71
    %116 = vmatprep.subr.mxu0 0.0
    %117 = vmatpush1.xpose.msra.mxu0 %v74
    %118 = vmatprep.subr.mxu0 0.0
    %119 = vmatpush1.xpose.msra.mxu0 %v77
    %120 = vmatprep.subr.mxu0 0.0
    %121 = vmatpush1.xpose.msra.mxu0 %v80
    %122 = vmatprep.subr.mxu0 0.0
    %123 = vmatpush1.xpose.msra.mxu0 %v83
    %124 = vmatprep.subr.mxu0 0.0
    %125 = vmatpush1.xpose.msra.mxu0 %v86
    %126 = vmatprep.subr.mxu0 0.0
    %127 = vmatpush1.xpose.msra.mxu0 %v89
    %128 = vmatprep.subr.mxu0 0.0
    %129 = vmatpush1.xpose.msra.mxu0 %v92
    %130 = vmatprep.subr.mxu0 0.0
    %131 = vmatpush1.xpose.msra.mxu0 %v95
    %132 = vmatprep.subr.mxu0 0.0
    %133 = vmatpush1.xpose.msra.mxu0 %v98
    %134 = vmatprep.subr.mxu0 0.0
    %135 = vmatpush1.xpose.msra.mxu0 %v101
    %136 = vmatprep.subr.mxu0 0.0
    %137 = vmatpush1.xpose.msra.mxu0 %v104
    %138 = vmatprep.subr.mxu0 0.0
    %139 = vmatpush1.xpose.msra.mxu0 0.0
    %140 = vmatprep.subr.mxu0 0.0
    %141 = vmatpush1.xpose.msra.mxu0 0.0
    %142 = vmatprep.subr.mxu0 0.0
    %143 = vmatpush1.xpose.msra.mxu0 0.0
    %144 = vmatprep.subr.mxu0 0.0
    %145 = vmatpush1.xpose.msra.mxu0 0.0
    %146 = vmatprep.subr.mxu0 0.0
    %147 = vmatpush1.xpose.msra.mxu0 0.0
    %148 = vmatprep.subr.mxu0 0.0
    %149 = vmatpush1.xpose.msra.mxu0 0.0
    %150 = vmatprep.subr.mxu0 0.0
    %151 = vmatpush1.xpose.msra.mxu0 0.0
    %152 = vmatprep.subr.mxu0 0.0
    %153 = vmatpush1.xpose.msra.mxu0 0.0
    %154 = vmatprep.subr.mxu0 0.0
    %155 = vmatpush1.xpose.msra.mxu0 0.0
    %156 = vmatprep.subr.mxu0 0.0
    %157 = vmatpush1.xpose.msra.mxu0 0.0
    %158 = vmatprep.subr.mxu0 0.0
    %159 = vmatpush1.xpose.msra.mxu0 0.0
    %160 = vmatprep.subr.mxu0 0.0
    %161 = vmatpush1.xpose.msra.mxu0 0.0
    %162 = vmatprep.subr.mxu0 0.0
    %163 = vmatpush1.xpose.msra.mxu0 0.0
    %164 = vmatprep.subr.mxu0 0.0
    %165 = vmatpush1.xpose.msra.mxu0 0.0
    %166 = vmatprep.subr.mxu0 0.0
    %167 = vmatpush1.xpose.msra.mxu0 0.0
    %168 = vmatprep.subr.mxu0 0.0
    %169 = vmatpush1.xpose.msra.mxu0 0.0
    %170 = vmatprep.mubr.f32.mxu0 0.0
    %171 = vmatmul.mubr.f32.gmra.mrb[0].mxu0 %v53
    %v172 = vpop.f32.mrb[0].mxu0
    %v173 = vadd.f32 %v44, %v172
    %v174 = vpop.f32.mrb[0].mxu0
    %175 = vmatprep.mubr.f32.mxu0 0.0
    %176 = vmatmul.mubr.f32.gmra.mrb[0].mxu0 %v56
    %v177 = vpop.f32.mrb[0].mxu0
    %v178 = vadd.f32 %v49, %v177
    %v179 = vpop.f32.mrb[0].mxu0
    %180 = vdwg.mxu0
    %v181 = vmax.f32 %v173, 0.0
    %v182 = vmax.f32 %v178, 0.0
    %v183 = vld [vmem:[%s3] sm:$0x1f]
    %v184 = vld [vmem:[%s4] sm:$0x1f]
    %186 = vset.pattern.permute.xlu0 0
    %187 = vperm.xlu0 %186, %v184
    %v188 = vpop.permute.xlu0 %187
    %v191 = vsel %vm51, %v183, 0
    %vm193 = vcmask 1041408
    %v195 = vsel %vm193, %v182, 0
    %197 = vmatprep.subr.mxu0 0.0
    %198 = vmatpush1.msra.mxu0 %v181
    %199 = vmatprep.subr.mxu0 0.0
    %200 = vmatpush1.msra.mxu0 %v195
    %201 = vmatprep.subr.mxu0 0.0
    %202 = vmatpush1.msra.mxu0 0.0
    %203 = vmatprep.subr.mxu0 0.0
    %204 = vmatpush1.msra.mxu0 0.0
    %205 = vmatprep.subr.mxu0 0.0
    %206 = vmatpush1.msra.mxu0 0.0
    %207 = vmatprep.subr.mxu0 0.0
    %208 = vmatpush1.msra.mxu0 0.0
    %209 = vmatprep.subr.mxu0 0.0
    %210 = vmatpush1.msra.mxu0 0.0
    %211 = vmatprep.subr.mxu0 0.0
    %212 = vmatpush1.msra.mxu0 0.0
    %213 = vmatprep.subr.mxu0 0.0
    %214 = vmatpush1.msra.mxu0 0.0
    %215 = vmatprep.subr.mxu0 0.0
    %216 = vmatpush1.msra.mxu0 0.0
    %217 = vmatprep.subr.mxu0 0.0
    %218 = vmatpush1.msra.mxu0 0.0
    %219 = vmatprep.subr.mxu0 0.0
    %220 = vmatpush1.msra.mxu0 0.0
    %221 = vmatprep.subr.mxu0 0.0
    %222 = vmatpush1.msra.mxu0 0.0
    %223 = vmatprep.subr.mxu0 0.0
    %224 = vmatpush1.msra.mxu0 0.0
    %225 = vmatprep.subr.mxu0 0.0
    %226 = vmatpush1.msra.mxu0 0.0
    %227 = vmatprep.subr.mxu0 0.0
    %228 = vmatpush1.msra.mxu0 0.0
    %229 = vmatprep.subr.mxu0 0.0
    %230 = vmatpush1.msra.mxu0 0.0
    %231 = vmatprep.subr.mxu0 0.0
    %232 = vmatpush1.msra.mxu0 0.0
    %233 = vmatprep.subr.mxu0 0.0
    %234 = vmatpush1.msra.mxu0 0.0
    %235 = vmatprep.subr.mxu0 0.0
    %236 = vmatpush1.msra.mxu0 0.0
    %237 = vmatprep.subr.mxu0 0.0
    %238 = vmatpush1.msra.mxu0 0.0
    %239 = vmatprep.subr.mxu0 0.0
    %240 = vmatpush1.msra.mxu0 0.0
    %241 = vmatprep.subr.mxu0 0.0
    %242 = vmatpush1.msra.mxu0 0.0
    %243 = vmatprep.subr.mxu0 0.0
    %244 = vmatpush1.msra.mxu0 0.0
    %245 = vmatprep.subr.mxu0 0.0
    %246 = vmatpush1.msra.mxu0 0.0
    %247 = vmatprep.subr.mxu0 0.0
    %248 = vmatpush1.msra.mxu0 0.0
    %249 = vmatprep.subr.mxu0 0.0
    %250 = vmatpush1.msra.mxu0 0.0
    %251 = vmatprep.subr.mxu0 0.0
    %252 = vmatpush1.msra.mxu0 0.0
    %253 = vmatprep.subr.mxu0 0.0
    %254 = vmatpush1.msra.mxu0 0.0
    %255 = vmatprep.subr.mxu0 0.0
    %256 = vmatpush1.msra.mxu0 0.0
    %257 = vmatprep.subr.mxu0 0.0
    %258 = vmatpush1.msra.mxu0 0.0
    %259 = vmatprep.subr.mxu0 0.0
    %260 = vmatpush1.msra.mxu0 0.0
    %261 = vmatprep.mubr.f32.mxu0 0.0
    %262 = vmatmul.mubr.f32.gmra.mrb[0].mxu0 %v191
    %v263 = vpop.f32.mrb[0].mxu0
    %v264 = vadd.f32 %v188, %v263
    %v265 = vpop.f32.mrb[0].mxu0
    %266 = vdwg.mxu0
    %267 = vst [vmem:[#allocation2] sm:$0x1f] %v264
    // Predicated region
    $region22: #{tpu_custom_call.1} parent=1 // pred_check
      _
    $region23: #{tpu_custom_call.1} parent=1 // pred_check_branch
      %269 = sbr.rel (0) target = $region25
    $region24: #{tpu_custom_call.1} parent=1 // pred_region
      %s271 = ssub.s32 128, 128
      %272 = vsyncadd [#allocation3], %s271
      %s274 = sshll.u32 [#allocation2], 4
      %s275 = int_to_ptr.vmem [resolvable:$true] %s274
      %277 = dma.vmem_to_hbm [thread:$0]  %s275, 128, %s5, [#allocation3]
    $region25: #{tpu_custom_call.1} parent=1 // pred_fallthru
      _
    // Predicated region
    $region26: #{tpu_custom_call.1} parent=1 // pred_check
      _
    $region27: #{tpu_custom_call.1} parent=1 // pred_check_branch
      %279 = sbr.rel (0) target = $region29
    $region28: #{tpu_custom_call.1} parent=1 // pred_region
      %280 = dma.done [#allocation3], 128
    $region29: #{tpu_custom_call.1} parent=1 // pred_fallthru
      _
    %281 = vsyncpa [#allocation3], 1

</llo_original>
